<compile_context>
chip_gen: v7x
topology: tpu7x:2x2x1
jax: 0.10.0
libtpu: 0.0.40
codegen_flags: <defaults>
</compile_context>

<pallas_src>
import functools

import jax
import jax.numpy as jnp
from jax.experimental import pallas as pl
from jax.experimental.pallas import tpu as pltpu


@functools.lru_cache(maxsize=None)
def _roll_matches_jnp_roll():
    """Probe pltpu.roll's rotation convention once, in the same execution mode
    as the main kernel (a compiled pallas_call on the default backend).

    Returns True iff pltpu.roll(x, s, axis)[i] == x[(i - s) % n] (the jnp.roll
    convention: elements move toward higher indices).  Raises on anything that
    matches neither known convention instead of silently guessing.
    """
    def probe(x_ref, o_ref):
        o_ref[...] = pltpu.roll(x_ref[...], shift=1, axis=1)

    with jax.ensure_compile_time_eval():
        x = jnp.broadcast_to(jnp.arange(128, dtype=jnp.float32), (8, 128))
        y = pl.pallas_call(
            probe, out_shape=jax.ShapeDtypeStruct((8, 128), jnp.float32))(x)
        y = jax.device_get(y)
    if float(y[0, 0]) == 127.0 and float(y[0, 1]) == 0.0:
        return True       # jnp.roll convention
    if float(y[0, 0]) == 1.0 and float(y[0, 1]) == 2.0:
        return False      # opposite convention
    raise RuntimeError("pltpu.roll convention probe returned unexpected data")


def _edge_mask(dy, dx, hpos, wpos, H, W):
    """(1, B*H*W) bool mask: True where the (dy, dx) conv tap is in-bounds."""
    m = None
    if dy == 0:
        m = hpos >= 1
    elif dy == 2:
        m = hpos <= H - 2
    if dx == 0:
        mw = wpos >= 1
        m = mw if m is None else (m & mw)
    elif dx == 2:
        mw = wpos <= W - 2
        m = mw if m is None else (m & mw)
    return m  # None for the centre tap (always in-bounds)


def _cnn_extract_kernel(x_ref, w1_ref, b1_ref, w2_ref, b2_ref, o_ref, h1_ref,
                        *, H, W, B, Cin, C1, Cout, roll_like_jnp):
    """One group of B images per grid step.

    x_ref  : (1, Cin, B*H*W)  inputs; channels on sublanes, (b, h, w) on lanes
    w1_ref : (C1, 9*Cin)      conv1 weights, contraction index ordered (dy, dx, cin)
    b1_ref : (C1, 1)
    w2_ref : (Cout, 9*C1)     conv2 weights, contraction index ordered (dy, dx, c1)
    b2_ref : (Cout, 1)
    o_ref  : (1, Cout, B)     per-image pooled features
    h1_ref : (C1, B*H*W)      VMEM scratch for the conv1 activation (keeps the
                              conv2 tap loop's register pressure low)
    """
    HW = H * W
    BHW = B * HW

    # Per-lane (h, w) coordinates inside each image (lane = b*H*W + h*W + w).
    lane = jax.lax.broadcasted_iota(jnp.int32, (1, BHW), 1)
    wpos = lane % W
    hpos = (lane // W) % H
    masks = {(dy, dx): _edge_mask(dy, dx, hpos, wpos, H, W)
             for dy in range(3) for dx in range(3)}

    def shifted(v, dy, dx):
        # shifted(v)[:, b*HW + h*W + w] = v[:, b*HW + (h+dy-1)*W + (w+dx-1)]
        # where that tap lies inside the same image, else 0 (== zero padding).
        # Invariant (k=3, pad=1, H >= 2, W >= 2): every lane where the roll
        # wraps across a row/image/array boundary is zeroed by the edge mask.
        off = (dy - 1) * W + (dx - 1)
        if off != 0:
            s = (-off) % BHW if roll_like_jnp else off % BHW
            v = pltpu.roll(v, shift=s, axis=1)
        m = masks[(dy, dx)]
        if m is not None:
            v = jnp.where(m, v, 0.0)
        return v

    # ---- conv1 + ReLU: tap-wise accumulation, no im2col scratch ----
    xb = x_ref[0]                                        # (Cin, BHW)
    h1 = jnp.zeros((C1, BHW), jnp.float32)
    for dy in range(3):
        for dx in range(3):
            kk = dy * 3 + dx
            wk = w1_ref[:, kk * Cin:(kk + 1) * Cin]      # (C1, Cin)
            tap = shifted(xb, dy, dx)                    # (Cin, BHW)
            if Cin == 1:
                # K=1 matmul would be <1% MXU-efficient; broadcast FMA on the
                # (otherwise idle) VPU instead.
                h1 = h1 + wk * tap
            else:
                h1 = h1 + jnp.dot(wk, tap,
                                  preferred_element_type=jnp.float32)
    h1_ref[...] = jnp.maximum(h1 + b1_ref[...], 0.0)     # (C1, BHW)

    # ---- conv2 + ReLU: tap-wise accumulation; shifted patches flow
    #      VMEM load -> XLU roll -> MXU without an im2col round-trip ----
    h2 = jnp.zeros((Cout, BHW), jnp.float32)
    for dy in range(3):
        for dx in range(3):
            kk = dy * 3 + dx
            wk = w2_ref[:, kk * C1:(kk + 1) * C1]        # (Cout, C1)
            tap = shifted(h1_ref[...], dy, dx)           # (C1, BHW)
            h2 = h2 + jnp.dot(wk, tap,
                              preferred_element_type=jnp.float32)
    h2 = jnp.maximum(h2 + b2_ref[...], 0.0)              # (Cout, BHW)

    # ---- spatial mean: per-image lane-segment reductions (replaces the old
    #      (BHW, B) pooling-matrix matmul + its strided DMA) ----
    inv_hw = 1.0 / float(HW)
    cols = [jnp.sum(h2[:, b * HW:(b + 1) * HW], axis=1, keepdims=True)
            for b in range(B)]
    o_ref[0] = jnp.concatenate(cols, axis=1) * inv_hw    # (Cout, B)


def _cnn_extract_impl(x_nchw, w1_oihw, b1, w2_oihw, b2, *, images_per_step,
                      roll_like_jnp):
    N, Cin, H, W = x_nchw.shape
    C1 = w1_oihw.shape[0]
    Cout = w2_oihw.shape[0]
    HW = H * W

    # Images per grid step.  Keep the grid length >= 2 whenever N > 1 so a
    # v7x megacore ("parallel" grid axis) gets work on both TensorCores.
    # TODO(synk): for large N, sweep images_per_step up to 16-32 with the h2
    # accumulator tiled/in VMEM scratch (at B=16 it no longer fits registers).
    B = min(images_per_step, N)
    if N > 1 and -(-N // B) < 2:
        B = (N + 1) // 2
    G = -(-N // B)
    Np = G * B

    x = x_nchw.astype(jnp.float32)
    if Np != N:
        x = jnp.concatenate(
            [x, jnp.zeros((Np - N, Cin, H, W), jnp.float32)], axis=0)

    # (Np, Cin, H, W) -> (G, Cin, B*H*W) with the lane axis ordered (b, h, w).
    # For Cin == 1 (the module default) this is a free metadata reshape.
    # TODO(synk): for Cin > 1 this materializes one transposed copy in HBM; it
    # could be folded into the kernel's input DMA with an extra grid axis.
    x = x.reshape(G, B, Cin, HW).transpose(0, 2, 1, 3).reshape(G, Cin, B * HW)

    # OIHW -> (C_out_i, 9*C_in_i), contraction index ordered (dy, dx, cin).
    w1m = jnp.transpose(w1_oihw, (0, 2, 3, 1)).reshape(C1, 9 * Cin)
    w1m = w1m.astype(jnp.float32)
    w2m = jnp.transpose(w2_oihw, (0, 2, 3, 1)).reshape(Cout, 9 * C1)
    w2m = w2m.astype(jnp.float32)
    b1c = b1.reshape(C1, 1).astype(jnp.float32)
    b2c = b2.reshape(Cout, 1).astype(jnp.float32)

    kernel = functools.partial(
        _cnn_extract_kernel,
        H=H, W=W, B=B, Cin=Cin, C1=C1, Cout=Cout,
        roll_like_jnp=roll_like_jnp)

    # TODO(synk): for large G, stage the output in a lane-dense (Cout, 128)
    # block resident across 128//B grid steps instead of (1, Cout, B) writes.
    out = pl.pallas_call(
        kernel,
        out_shape=jax.ShapeDtypeStruct((G, Cout, B), jnp.float32),
        grid_spec=pltpu.PrefetchScalarGridSpec(
            num_scalar_prefetch=0,
            grid=(G,),
            in_specs=[
                pl.BlockSpec((1, Cin, B * HW), lambda g: (g, 0, 0)),
                pl.BlockSpec((C1, 9 * Cin), lambda g: (0, 0)),
                pl.BlockSpec((C1, 1), lambda g: (0, 0)),
                pl.BlockSpec((Cout, 9 * C1), lambda g: (0, 0)),
                pl.BlockSpec((Cout, 1), lambda g: (0, 0)),
            ],
            out_specs=pl.BlockSpec((1, Cout, B), lambda g: (g, 0, 0)),
            scratch_shapes=[
                pltpu.VMEM((C1, B * HW), jnp.float32),
            ],
        ),
        compiler_params=pltpu.CompilerParams(
            dimension_semantics=("parallel",)),
    )(x, w1m, b1c, w2m, b2c)

    feat = jnp.transpose(out, (0, 2, 1)).reshape(Np, Cout)
    return feat[:N]


_cnn_extract_jit = jax.jit(
    _cnn_extract_impl, static_argnames=("images_per_step", "roll_like_jnp"))


def cnn_extract(x_nchw, w1_oihw, b1, w2_oihw, b2, *, images_per_step=8):
    """x_nchw: (N, Cin, H, W).  Returns (N, Cout) float32."""
    return _cnn_extract_jit(
        x_nchw, w1_oihw, b1, w2_oihw, b2,
        images_per_step=images_per_step,
        roll_like_jnp=_roll_matches_jnp_roll())


def _reference(x_nchw, w1_oihw, b1, w2_oihw, b2):
    """Pure-JAX reference (matches PyTorch Conv2d semantics)."""
    dn = jax.lax.conv_dimension_numbers(x_nchw.shape, w1_oihw.shape,
                                        ("NCHW", "OIHW", "NCHW"))
    h = jax.lax.conv_general_dilated(x_nchw, w1_oihw, (1, 1), "SAME",
                                     dimension_numbers=dn)
    h = jax.nn.relu(h + b1[None, :, None, None])
    dn2 = jax.lax.conv_dimension_numbers(h.shape, w2_oihw.shape,
                                         ("NCHW", "OIHW", "NCHW"))
    y = jax.lax.conv_general_dilated(h, w2_oihw, (1, 1), "SAME",
                                     dimension_numbers=dn2)
    y = jax.nn.relu(y + b2[None, :, None, None])
    return y.mean(axis=(2, 3))


if __name__ == "__main__":
    def _make_case(key, N, Cin, Cout, H, W):
        C1 = 8
        k_x, k_w1, k_b1, k_w2, k_b2 = jax.random.split(key, 5)
        fan1 = Cin * 9
        fan2 = C1 * 9
        x = jax.random.normal(k_x, (N, Cin, H, W), dtype=jnp.float32)
        # PyTorch Conv2d-style uniform(-1/sqrt(fan_in), +1/sqrt(fan_in)) init.
        w1 = jax.random.uniform(k_w1, (C1, Cin, 3, 3), jnp.float32,
                                -1.0 / fan1 ** 0.5, 1.0 / fan1 ** 0.5)
        b1 = jax.random.uniform(k_b1, (C1,), jnp.float32,
                                -1.0 / fan1 ** 0.5, 1.0 / fan1 ** 0.5)
        w2 = jax.random.uniform(k_w2, (Cout, C1, 3, 3), jnp.float32,
                                -1.0 / fan2 ** 0.5, 1.0 / fan2 ** 0.5)
        b2 = jax.random.uniform(k_b2, (Cout,), jnp.float32,
                                -1.0 / fan2 ** 0.5, 1.0 / fan2 ** 0.5)
        return x, w1, b1, w2, b2

    key = jax.random.PRNGKey(0)
    k1, k2 = jax.random.split(key)

    # Case 1: module defaults (in_channels=1, out_channels=16); 16 images so
    # the grid has 2 steps of 8 images each (keeps both v7x TensorCores busy).
    x, w1, b1, w2, b2 = _make_case(k1, N=16, Cin=1, Cout=16, H=16, W=16)
    out = jax.block_until_ready(cnn_extract(x, w1, b1, w2, b2))
    ref = _reference(x, w1, b1, w2, b2)
    assert out.shape == (16, 16)
    assert jnp.allclose(out, ref, atol=1e-4, rtol=1e-4), "case 1 mismatch"

    # Case 2: multi-channel input + ragged batch (exercises the tap-wise
    # matmul conv1 path, the G>=2 batch grouping, and the zero-pad/slice).
    x, w1, b1, w2, b2 = _make_case(k2, N=5, Cin=3, Cout=16, H=16, W=16)
    out = jax.block_until_ready(cnn_extract(x, w1, b1, w2, b2))
    ref = _reference(x, w1, b1, w2, b2)
    assert out.shape == (5, 16)
    assert jnp.allclose(out, ref, atol=1e-4, rtol=1e-4), "case 2 mismatch"

    print("KERNEL_OK")
</pallas_src>

<mosaic_0001>
module attributes {stable_mosaic.version = 11 : i64} {
  func.func @probe(%arg0: memref<8x128xf32, #tpu.memory_space<vmem>>, %arg1: memref<8x128xf32, #tpu.memory_space<vmem>>) attributes {dimension_semantics = [], scalar_prefetch = 0 : i64, scratch_operands = 0 : i64, tpu.core_type = #tpu.core_type<tc>} {
    %c0 = arith.constant 0 : index
    %c0_0 = arith.constant 0 : index
    %0 = vector.load %arg0[%c0, %c0_0] : memref<8x128xf32, #tpu.memory_space<vmem>>, vector<8x128xf32>
    %c1_i32 = arith.constant 1 : i32
    %1 = tpu.dynamic_rotate %0 by %c1_i32 dim 1 : vector<8x128xf32>, i32 -> vector<8x128xf32>
    %c0_1 = arith.constant 0 : index
    %c0_2 = arith.constant 0 : index
    %2 = vector.load %arg1[%c0_1, %c0_2] : memref<8x128xf32, #tpu.memory_space<vmem>>, vector<8x128xf32>
    tpu.vector_store %arg1[%c0_1, %c0_2], %1 {strides = array<i32>} : memref<8x128xf32, #tpu.memory_space<vmem>>, vector<8x128xf32>,
    return
  }
}

</mosaic_0001>

<llo_original>
// kernel: tpu_custom_call.1
$region0: #{tpu_custom_call.1}
  #allocation0 [shape = 'u32[]', space=smem, size = 0x4, offset = 0x4, fixed_abs, tag = 'smem constant byte address 0x4 - core index']
  #allocation1 [shape = 'u32[144,128]{1,0:T(1,128)}', space=vmem, size = 0x12000, scoped, tag = 'internal scratch']
  %s0 = inlined_call_operand.hbm [shape: f32[8,128], index: 0, kind: input, shape index: {}]
  %s1 = inlined_call_operand.hbm [shape: f32[8,128], index: 1, kind: output, shape index: {}]
  %s2 = sld [smem:[#allocation0]]
  $region18: #{tpu_custom_call.1} parent=0
    _
  %s4 = ssub.s32 1, %s2
  %s5 = scalar_select 0, %s4, %s2
  $region1: #{tpu_custom_call.1} parent=0
    #allocation2 [shape = 'u8[4096]{0}', space=vmem, size = 0x1000, scoped, tag = 'input window, operand 0, single buffered']
    #allocation3 [shape = 's32[1]{0}', space=sflag, size = 0x4, scoped, tag = 'scoped memory for tpu_custom_call.1']
    #allocation4 [shape = 's32[1]{0}', space=sflag, size = 0x4, scoped, tag = 'scoped memory for tpu_custom_call.1']
    #allocation5 [shape = 'u8[4096]{0}', space=vmem, size = 0x1000, scoped, tag = 'output window, operand 0, single buffered']
    %6 = vsyncpa [#allocation3], 0
    %7 = vsyncpa [#allocation4], 0
    // Predicated region
    $region2: #{tpu_custom_call.1} parent=1 // pred_check
      _
    $region3: #{tpu_custom_call.1} parent=1 // pred_check_branch
      %9 = sbr.rel (0) target = $region5
    $region4: #{tpu_custom_call.1} parent=1 // pred_region
      %s11 = ssub.s32 128, 128
      %12 = vsyncadd [#allocation3], %s11
      %s14 = sshll.u32 [#allocation2], 4
      %s15 = int_to_ptr.vmem [resolvable:$true] %s14
      %17 = dma.hbm_to_vmem [thread:$0]  %s0, 128, %s15, [#allocation3]
    $region5: #{tpu_custom_call.1} parent=1 // pred_fallthru
      _
    // Predicated region
    $region6: #{tpu_custom_call.1} parent=1 // pred_check
      _
    $region7: #{tpu_custom_call.1} parent=1 // pred_check_branch
      %19 = sbr.rel (0) target = $region9
    $region8: #{tpu_custom_call.1} parent=1 // pred_region
      %20 = dma.done [#allocation3], 128
    $region9: #{tpu_custom_call.1} parent=1 // pred_fallthru
      _
    %v21 = vld [vmem:[#allocation2] sm:$0xff]
    %22 = vrot.lane.b32.xlu0 %v21, 1
    %v23 = vpop.permute.xlu0 %22
    %24 = vst [vmem:[#allocation5] sm:$0xff] %v23
    // Predicated region
    $region10: #{tpu_custom_call.1} parent=1 // pred_check
      _
    $region11: #{tpu_custom_call.1} parent=1 // pred_check_branch
      %26 = sbr.rel (0) target = $region13
    $region12: #{tpu_custom_call.1} parent=1 // pred_region
      %s28 = ssub.s32 128, 128
      %29 = vsyncadd [#allocation4], %s28
      %s31 = sshll.u32 [#allocation5], 4
      %s32 = int_to_ptr.vmem [resolvable:$true] %s31
      %34 = dma.vmem_to_hbm [thread:$0]  %s32, 128, %s1, [#allocation4]
    $region13: #{tpu_custom_call.1} parent=1 // pred_fallthru
      _
    // Predicated region
    $region14: #{tpu_custom_call.1} parent=1 // pred_check
      _
    $region15: #{tpu_custom_call.1} parent=1 // pred_check_branch
      %36 = sbr.rel (0) target = $region17
    $region16: #{tpu_custom_call.1} parent=1 // pred_region
      %37 = dma.done [#allocation4], 128
    $region17: #{tpu_custom_call.1} parent=1 // pred_fallthru
      _
    %38 = vsyncpa [#allocation3], 1
    %39 = vsyncpa [#allocation4], 1

</llo_original>
